<compile_context>
chip_gen: v7x
topology: tpu7x:2x2x1
jax: 0.10.0
libtpu: 0.0.40
codegen_flags: <defaults>
</compile_context>

<pallas_src>
import jax
import jax.numpy as jnp
from jax.experimental import pallas as pl
from jax.experimental.pallas import tpu as pltpu

EPS = 1e-5

_FUSED_DISABLED = False  # flipped if the fused path ever fails to lower


# --------------------------------------------------------------------------- #
# utilities
# --------------------------------------------------------------------------- #
def _vmem_capacity_bytes():
    """Physical per-core VMEM; conservative 64 MiB (v7x) if the query fails."""
    try:
        info = pltpu.get_tpu_info()
        cap = int(getattr(info, "vmem_capacity_bytes", 0) or 0)
        if cap > 0:
            return cap
    except Exception:
        pass
    return 64 << 20


def _pick_block_n(n_samples, in_bps, out_bps, work_b, budget, target_in):
    """Largest samples-per-grid-step nb s.t. double-buffered in+out blocks plus
    the transient working set fit `budget`, the input block stays near
    `target_in`, and at least two (preferably an even number of) grid steps
    remain so v7x's two TensorCores both get work."""
    cands = []
    for nb in range(1, n_samples + 1):
        if n_samples % nb:
            continue
        if 2 * nb * (in_bps + out_bps) + work_b > budget:
            continue
        if nb * in_bps > target_in:
            continue
        if n_samples >= 2 and n_samples // nb < 2:
            continue
        cands.append(nb)
    if not cands:
        return 1
    even = [nb for nb in cands if (n_samples // nb) % 2 == 0]
    return max(even) if even else max(cands)


def _compiler_params(vmem_needed):
    """Always set vmem_limit_bytes (fixes v5e's 16 MiB default-limit gap) and
    clamp it below physical VMEM (fixes the v7x 64 MiB overflow)."""
    cap = _vmem_capacity_bytes()
    limit = int(max(vmem_needed * 1.2 + (2 << 20), 32 << 20))
    limit = min(limit, cap - (8 << 20))
    limit = max(limit, 1 << 20)
    return pltpu.CompilerParams(
        dimension_semantics=("parallel",),
        vmem_limit_bytes=int(limit),
    )


def _groupnorm_store(y, g, b, o_ref, i, inv_n):
    """GroupNorm(1, C) on one sample's (C, P) f32 conv output, fused store."""
    mean = jnp.sum(y) * inv_n                    # two-pass stats (no cancellation)
    yc = y - mean
    var = jnp.sum(yc * yc) * inv_n
    scale = jax.lax.rsqrt(var + EPS) * g         # (C, 1)
    o_ref[i] = (yc * scale + b).astype(o_ref.dtype)


# --------------------------------------------------------------------------- #
# fused kernel: in-kernel space-to-depth + conv matmul + GroupNorm
# --------------------------------------------------------------------------- #
def _fused_downsample_kernel(x_ref, t0_ref, t1_ref, w_ref, g_ref, b_ref, o_ref):
    # x_ref : (nb, C*Ho, 2*W)   raw f32 input view; rows=(c,ho), lanes=(h&1, w)
    # t0/t1 : (W, Wo)           0/1 selection matrices (w = 2*wo + kw)
    # w_ref : (4, C, C)         conv weight per phase q = 2*kh + kw
    # g/b   : (C, 1)            GroupNorm affine (f32)
    # o_ref : (nb, C, P)        output, P = Ho*Wo (NCHW-flattened)
    nb = x_ref.shape[0]
    c = o_ref.shape[1]
    p = o_ref.shape[2]
    wp = x_ref.shape[2] // 2                     # = W (even)
    cdt = w_ref.dtype
    inv_n = 1.0 / float(c * p)

    t0 = t0_ref[...]
    t1 = t1_ref[...]
    g = g_ref[...]
    b = b_ref[...]

    def body(i, carry):
        xi = x_ref.at[i]                                      # (C*Ho, 2W) view
        x_even = xi[:, pl.ds(0, wp)].astype(cdt)              # rows h = 2*ho   (kh=0)
        x_odd = xi[:, pl.ds(wp, wp)].astype(cdt)              # rows h = 2*ho+1 (kh=1)

        y = jnp.zeros((c, p), jnp.float32)
        for q in range(4):                                    # q = 2*kh + kw
            xk = x_even if q < 2 else x_odd
            tk = t0 if (q % 2 == 0) else t1
            u = jnp.dot(xk, tk)                               # (C*Ho, Wo): pure selection
            u = u.reshape(c, p)                               # -> (C, Ho*Wo), VMEM-only relayout
            y = y + jnp.dot(w_ref[q], u,
                            preferred_element_type=jnp.float32)
        _groupnorm_store(y, g, b, o_ref, i, inv_n)
        return carry

    jax.lax.fori_loop(0, nb, body, 0, unroll=bool(nb <= 4))


def _downsample_fused(x, conv_w, gamma, beta, compute_dtype, out_dtype):
    B, C, H, W = x.shape                         # H, W already even here
    Ho, Wo = H // 2, W // 2
    P = Ho * Wo
    R, L = C * Ho, 2 * W

    # Free bitcast view: (B, C, 2Ho, W) -> (B, C*Ho, 2W).  Lane half [0, W) of
    # row (c, ho) is input row h = 2*ho, half [W, 2W) is h = 2*ho + 1.
    xv = x.reshape(B, R, L)

    w_stack = jnp.transpose(conv_w, (2, 3, 0, 1)).reshape(4, C, C).astype(compute_dtype)
    widx = jnp.arange(W)[:, None]
    woidx = jnp.arange(Wo)[None, :]
    t0 = (widx == 2 * woidx).astype(compute_dtype)            # select w = 2*wo
    t1 = (widx == 2 * woidx + 1).astype(compute_dtype)        # select w = 2*wo + 1
    g = gamma.reshape(C, 1).astype(jnp.float32)
    b = beta.reshape(C, 1).astype(jnp.float32)

    in_bps = R * L * x.dtype.itemsize                          # raw f32 sample
    out_bps = C * P * jnp.dtype(out_dtype).itemsize
    work_b = 40 * C * P + 8 * C * C                            # transient per-sample values
    cap = _vmem_capacity_bytes()
    budget = min(28 << 20, int(0.4 * cap))
    nb = _pick_block_n(B, in_bps, out_bps, work_b, budget, target_in=8 << 20)
    vmem_needed = (2 * nb * (in_bps + out_bps) + work_b
                   + 2 * w_stack.size * w_stack.dtype.itemsize + (1 << 20))

    out = pl.pallas_call(
        _fused_downsample_kernel,
        out_shape=jax.ShapeDtypeStruct((B, C, P), out_dtype),
        grid_spec=pltpu.PrefetchScalarGridSpec(
            num_scalar_prefetch=0,
            grid=(B // nb,),
            in_specs=[
                pl.BlockSpec((nb, R, L), lambda n: (n, 0, 0)),
                pl.BlockSpec((W, Wo), lambda n: (0, 0)),
                pl.BlockSpec((W, Wo), lambda n: (0, 0)),
                pl.BlockSpec((4, C, C), lambda n: (0, 0, 0)),
                pl.BlockSpec((C, 1), lambda n: (0, 0)),
                pl.BlockSpec((C, 1), lambda n: (0, 0)),
            ],
            out_specs=pl.BlockSpec((nb, C, P), lambda n: (n, 0, 0)),
        ),
        compiler_params=_compiler_params(vmem_needed),
    )(xv, t0, t1, w_stack, g, b)

    return out.reshape(B, C, Ho, Wo)             # free bitcast back to NCHW


# --------------------------------------------------------------------------- #
# fallback kernel: wrapper-side space-to-depth (known-good on all generations)
# --------------------------------------------------------------------------- #
def _patches_downsample_kernel(p_ref, w_ref, g_ref, b_ref, o_ref):
    # p_ref: (nb, 4C, P)  patches; w_ref: (C, 4C); g/b: (C, 1); o_ref: (nb, C, P)
    nb = p_ref.shape[0]
    c = o_ref.shape[1]
    p = o_ref.shape[2]
    inv_n = 1.0 / float(c * p)
    w = w_ref[...]
    g = g_ref[...]
    b = b_ref[...]

    def body(i, carry):
        y = jnp.dot(w, p_ref[i], preferred_element_type=jnp.float32)   # (C, P)
        _groupnorm_store(y, g, b, o_ref, i, inv_n)
        return carry

    jax.lax.fori_loop(0, nb, body, 0, unroll=bool(nb <= 4))


def _downsample_patches(x, conv_w, gamma, beta, compute_dtype, out_dtype):
    B, C, H, W = x.shape
    Ho, Wo = H // 2, W // 2
    P = Ho * Wo
    K4 = 4 * C

    # (n, c, ho, kh, wo, kw) -> (n, c, kh, kw, ho, wo) -> (N, 4C, P)
    xf = x.reshape(B, C, Ho, 2, Wo, 2)
    patches = jnp.transpose(xf, (0, 1, 3, 5, 2, 4)).reshape(B, K4, P).astype(compute_dtype)
    w_mat = conv_w.reshape(C, K4).astype(compute_dtype)
    g = gamma.reshape(C, 1).astype(jnp.float32)
    b = beta.reshape(C, 1).astype(jnp.float32)

    in_bps = K4 * P * patches.dtype.itemsize
    out_bps = C * P * jnp.dtype(out_dtype).itemsize
    work_b = 16 * C * P
    cap = _vmem_capacity_bytes()
    budget = min(28 << 20, int(0.4 * cap))
    nb = _pick_block_n(B, in_bps, out_bps, work_b, budget, target_in=8 << 20)
    vmem_needed = (2 * nb * (in_bps + out_bps) + work_b
                   + 2 * w_mat.size * w_mat.dtype.itemsize + (1 << 20))

    out = pl.pallas_call(
        _patches_downsample_kernel,
        out_shape=jax.ShapeDtypeStruct((B, C, P), out_dtype),
        grid_spec=pltpu.PrefetchScalarGridSpec(
            num_scalar_prefetch=0,
            grid=(B // nb,),
            in_specs=[
                pl.BlockSpec((nb, K4, P), lambda n: (n, 0, 0)),
                pl.BlockSpec((C, K4), lambda n: (0, 0)),
                pl.BlockSpec((C, 1), lambda n: (0, 0)),
                pl.BlockSpec((C, 1), lambda n: (0, 0)),
            ],
            out_specs=pl.BlockSpec((nb, C, P), lambda n: (n, 0, 0)),
        ),
        compiler_params=_compiler_params(vmem_needed),
    )(patches, w_mat, g, b)

    return out.reshape(B, C, Ho, Wo)


# --------------------------------------------------------------------------- #
# public wrapper
# --------------------------------------------------------------------------- #
def downsample_pallas(x, conv_w, gamma, beta, *, compute_dtype=jnp.bfloat16,
                      out_dtype=jnp.float32):
    """Downsample = Conv2d(C, C, 2, 2, bias=False) -> GroupNorm(1, C).

    x: (B, C, H, W).  conv_w: (C, C, 2, 2).  gamma/beta: (C,).
    compute_dtype: MXU input dtype (bf16 default, f32 for strict parity).
    out_dtype: output dtype (f32 default; bf16 halves writeback bytes)."""
    global _FUSED_DISABLED
    B, C, H, W = x.shape
    Ho, Wo = H // 2, W // 2
    if (H % 2) or (W % 2):                       # stride-2 conv drops the odd remainder
        x = x[:, :, : 2 * Ho, : 2 * Wo]

    if not _FUSED_DISABLED:
        try:
            return _downsample_fused(x, conv_w, gamma, beta, compute_dtype, out_dtype)
        except Exception:
            # TODO(synk): drop this fallback once the in-kernel (C*Ho, Wo) ->
            # (C, Ho*Wo) relayout is confirmed to lower on all TPU generations.
            _FUSED_DISABLED = True
    return _downsample_patches(x, conv_w, gamma, beta, compute_dtype, out_dtype)


# --------------------------------------------------------------------------- #
# pure-JAX reference (mirrors the PyTorch module)
# --------------------------------------------------------------------------- #
def downsample_ref(x, conv_w, gamma, beta, *, compute_dtype=jnp.float32):
    C = x.shape[1]
    y = jax.lax.conv_general_dilated(
        x.astype(compute_dtype), conv_w.astype(compute_dtype),
        window_strides=(2, 2), padding="VALID",
        dimension_numbers=("NCHW", "OIHW", "NCHW"),
        preferred_element_type=jnp.float32,
    )
    mean = jnp.mean(y, axis=(1, 2, 3), keepdims=True)
    var = jnp.mean((y - mean) ** 2, axis=(1, 2, 3), keepdims=True)
    yn = (y - mean) * jax.lax.rsqrt(var + EPS)
    return yn * gamma.reshape(1, C, 1, 1) + beta.reshape(1, C, 1, 1)


if __name__ == "__main__":
    key = jax.random.PRNGKey(0)
    k1, k2, k3, k4 = jax.random.split(key, 4)

    B, C, H, W = 2, 4, 16, 16
    x = jax.random.normal(k1, (B, C, H, W), dtype=jnp.float32)
    conv_w = jax.random.normal(k2, (C, C, 2, 2), dtype=jnp.float32) * 0.2
    gamma = jax.random.normal(k3, (C,), dtype=jnp.float32) * 0.1 + 1.0
    beta = jax.random.normal(k4, (C,), dtype=jnp.float32) * 0.1

    out = jax.block_until_ready(downsample_pallas(x, conv_w, gamma, beta))
    assert out.shape == (B, C, H // 2, W // 2)

    # Tight check against a reference with the same bf16 compute dtype
    # (f32 accumulation, f32 GroupNorm) -> differences are reduction-order only.
    ref_bf16 = downsample_ref(x, conv_w, gamma, beta, compute_dtype=jnp.bfloat16)
    assert jnp.allclose(out, ref_bf16, atol=5e-4, rtol=5e-4), \
        "mismatch vs bf16-compute reference"

    # Looser check against the full-f32 PyTorch-equivalent reference.
    ref_f32 = downsample_ref(x, conv_w, gamma, beta, compute_dtype=jnp.float32)
    assert jnp.allclose(out, ref_f32, atol=5e-2, rtol=5e-2), \
        "mismatch vs f32 reference"

    # bf16-output option (halves HBM writeback); GroupNorm stats stay f32.
    out_bf16 = jax.block_until_ready(
        downsample_pallas(x, conv_w, gamma, beta, out_dtype=jnp.bfloat16))
    assert out_bf16.dtype == jnp.bfloat16 and out_bf16.shape == out.shape
    assert jnp.allclose(out_bf16.astype(jnp.float32), ref_bf16, atol=3e-2, rtol=3e-2), \
        "mismatch for bf16 output"

    print("KERNEL_OK")
</pallas_src>

<mosaic_0001>
module attributes {stable_mosaic.version = 11 : i64} {
  func.func @_patches_downsample_kernel(%arg0: i32, %arg1: memref<1x16x64xbf16, #tpu.memory_space<vmem>>, %arg2: memref<4x16xbf16, #tpu.memory_space<vmem>>, %arg3: memref<4x1xf32, #tpu.memory_space<vmem>>, %arg4: memref<4x1xf32, #tpu.memory_space<vmem>>, %arg5: memref<1x4x64xf32, #tpu.memory_space<vmem>>) attributes {dimension_semantics = [#tpu.dimension_semantics<parallel>], iteration_bounds = array<i64: 2>, scalar_prefetch = 0 : i64, scratch_operands = 0 : i64, tpu.core_type = #tpu.core_type<tc>, window_params = [{transform_indices = @transform_0, window_bounds = array<i64: 1, 16, 64>}, {pipeline_mode = #tpu.pipeline_mode<synchronous>, transform_indices = @transform_1, window_bounds = array<i64: 4, 16>}, {pipeline_mode = #tpu.pipeline_mode<synchronous>, transform_indices = @transform_2, window_bounds = array<i64: 4, 1>}, {pipeline_mode = #tpu.pipeline_mode<synchronous>, transform_indices = @transform_3, window_bounds = array<i64: 4, 1>}, {transform_indices = @transform_4, window_bounds = array<i64: 1, 4, 64>}]} {
    %c0 = arith.constant 0 : index
    %c0_0 = arith.constant 0 : index
    %0 = vector.load %arg2[%c0, %c0_0] : memref<4x16xbf16, #tpu.memory_space<vmem>>, vector<4x16xbf16>
    %c0_1 = arith.constant 0 : index
    %c0_2 = arith.constant 0 : index
    %1 = vector.load %arg3[%c0_1, %c0_2] : memref<4x1xf32, #tpu.memory_space<vmem>>, vector<4x1xf32>
    %c0_3 = arith.constant 0 : index
    %c0_4 = arith.constant 0 : index
    %2 = vector.load %arg4[%c0_3, %c0_4] : memref<4x1xf32, #tpu.memory_space<vmem>>, vector<4x1xf32>
    %c0_i32 = arith.constant 0 : i32
    %3 = arith.index_cast %c0_i32 : i32 to index
    %c0_5 = arith.constant 0 : index
    %c0_6 = arith.constant 0 : index
    %4 = vector.load %arg1[%3, %c0_5, %c0_6] : memref<1x16x64xbf16, #tpu.memory_space<vmem>>, vector<1x16x64xbf16>
    %5 = vector.shape_cast %4 : vector<1x16x64xbf16> to vector<16x64xbf16>
    %cst = arith.constant dense<0.000000e+00> : vector<4x64xf32>
    %6 = tpu.matmul %0, %5, %cst {dimension_numbers = #tpu.dot_dimension_numbers<[1], [0], [0], [1], [0, 0, 1, 1], [], []>} : vector<4x16xbf16>, vector<16x64xbf16>, vector<4x64xf32> -> vector<4x64xf32>
    %7 = vector.shape_cast %6 : vector<4x64xf32> to vector<1x4x64xf32>
    %cst_7 = arith.constant dense<0.000000e+00> : vector<1xf32>
    %8 = vector.multi_reduction <add>, %7, %cst_7 [1, 2] : vector<1x4x64xf32> to vector<1xf32>
    %9 = vector.shape_cast %8 : vector<1xf32> to vector<1x1x1xf32>
    %10 = vector.extract %9[0, 0, 0] : f32 from vector<1x1x1xf32>
    %cst_8 = arith.constant 3.906250e-03 : f32
    %11 = arith.mulf %10, %cst_8 : f32
    %12 = vector.broadcast %11 : f32 to vector<4x64xf32>
    %13 = arith.subf %6, %12 : vector<4x64xf32>
    %14 = arith.mulf %13, %13 : vector<4x64xf32>
    %15 = vector.shape_cast %14 : vector<4x64xf32> to vector<1x4x64xf32>
    %cst_9 = arith.constant dense<0.000000e+00> : vector<1xf32>
    %16 = vector.multi_reduction <add>, %15, %cst_9 [1, 2] : vector<1x4x64xf32> to vector<1xf32>
    %17 = vector.shape_cast %16 : vector<1xf32> to vector<1x1x1xf32>
    %18 = vector.extract %17[0, 0, 0] : f32 from vector<1x1x1xf32>
    %cst_10 = arith.constant 3.906250e-03 : f32
    %19 = arith.mulf %18, %cst_10 : f32
    %cst_11 = arith.constant 9.99999974E-6 : f32
    %20 = arith.addf %19, %cst_11 : f32
    %21 = math.rsqrt %20 : f32
    %22 = vector.broadcast %21 : f32 to vector<4x1xf32>
    %23 = arith.mulf %22, %1 : vector<4x1xf32>
    %24 = vector.broadcast %23 : vector<4x1xf32> to vector<4x64xf32>
    %25 = arith.mulf %13, %24 : vector<4x64xf32>
    %26 = vector.broadcast %2 : vector<4x1xf32> to vector<4x64xf32>
    %27 = arith.addf %25, %26 : vector<4x64xf32>
    %28 = arith.index_cast %c0_i32 : i32 to index
    %c0_12 = arith.constant 0 : index
    %c0_13 = arith.constant 0 : index
    %29 = vector.load %arg5[%28, %c0_12, %c0_13] : memref<1x4x64xf32, #tpu.memory_space<vmem>>, vector<1x4x64xf32>
    %30 = vector.shape_cast %29 : vector<1x4x64xf32> to vector<4x64xf32>
    %31 = vector.shape_cast %27 : vector<4x64xf32> to vector<1x4x64xf32>
    tpu.vector_store %arg5[%28, %c0_12, %c0_13], %31 {strides = array<i32>} : memref<1x4x64xf32, #tpu.memory_space<vmem>>, vector<1x4x64xf32>,
    %c1_i32 = arith.constant 1 : i32
    return
  }
  func.func @transform_0(%arg0: i32) -> (i32, i32, i32) {
    %c0_i32 = arith.constant 0 : i32
    %c0_i32_0 = arith.constant 0 : i32
    %c0_i32_1 = arith.constant 0 : i32
    return %arg0, %c0_i32, %c0_i32_0 : i32, i32, i32
  }
  func.func @transform_1(%arg0: i32) -> (i32, i32) {
    %c0_i32 = arith.constant 0 : i32
    %c0_i32_0 = arith.constant 0 : i32
    %c0_i32_1 = arith.constant 0 : i32
    return %c0_i32, %c0_i32_0 : i32, i32
  }
  func.func @transform_2(%arg0: i32) -> (i32, i32) {
    %c0_i32 = arith.constant 0 : i32
    %c0_i32_0 = arith.constant 0 : i32
    %c0_i32_1 = arith.constant 0 : i32
    return %c0_i32, %c0_i32_0 : i32, i32
  }
  func.func @transform_3(%arg0: i32) -> (i32, i32) {
    %c0_i32 = arith.constant 0 : i32
    %c0_i32_0 = arith.constant 0 : i32
    %c0_i32_1 = arith.constant 0 : i32
    return %c0_i32, %c0_i32_0 : i32, i32
  }
  func.func @transform_4(%arg0: i32) -> (i32, i32, i32) {
    %c0_i32 = arith.constant 0 : i32
    %c0_i32_0 = arith.constant 0 : i32
    %c0_i32_1 = arith.constant 0 : i32
    return %arg0, %c0_i32, %c0_i32_0 : i32, i32, i32
  }
}

</mosaic_0001>

<llo_original>
// kernel: tpu_custom_call.1
$region0: #{tpu_custom_call.1}
  #allocation0 [shape = 'u32[]', space=smem, size = 0x4, offset = 0x4, fixed_abs, tag = 'smem constant byte address 0x4 - core index']
  #allocation1 [shape = 'u32[144,128]{1,0:T(1,128)}', space=vmem, size = 0x12000, scoped, tag = 'internal scratch']
  %s0 = inlined_call_operand.hbm [shape: bf16[2,16,64], index: 0, kind: input, shape index: {}]
  %s1 = inlined_call_operand.vmem [shape: bf16[4,16], index: 1, kind: input, shape index: {}]
  %s2 = inlined_call_operand.vmem [shape: f32[4,1], index: 2, kind: input, shape index: {}]
  %s3 = inlined_call_operand.vmem [shape: f32[4,1], index: 3, kind: input, shape index: {}]
  %s4 = inlined_call_operand.hbm [shape: f32[2,4,64], index: 4, kind: output, shape index: {}]
  %s5 = sld [smem:[#allocation0]]
  $region53: #{tpu_custom_call.1} parent=0
    _
  %s7 = ssub.s32 1, %s5
  %s8 = scalar_select 0, %s7, %s5
  $region1: #{tpu_custom_call.1} parent=0
    #allocation2 [shape = 'u8[8192]{0}', space=vmem, size = 0x2000, scoped, tag = 'input window, operand 0']
    #allocation3 [shape = 's32[2]{0}', space=sflag, size = 0x8, scoped, tag = 'scoped memory for tpu_custom_call.1']
    #allocation4 [shape = 's32[2]{0}', space=sflag, size = 0x8, scoped, tag = 'scoped memory for tpu_custom_call.1']
    #allocation5 [shape = 'u8[4096]{0}', space=vmem, size = 0x1000, scoped, tag = 'output window, operand 0']
    %9 = vsyncpa [#allocation3], 0
    %s10 = scalar_lea.sflag [#allocation3], 1
    %11 = vsyncpa %s10, 0
    %12 = vsyncpa [#allocation4], 0
    %s13 = scalar_lea.sflag [#allocation4], 1
    %14 = vsyncpa %s13, 0
    loop: start=0, step=1, limit=4
    $region2: #{tpu_custom_call.1} parent=1 // loop_pre_header
      _
    $region3: #{tpu_custom_call.1} parent=1 // loop_header
      %s16 = sphi 0, %s20
      %p17 = scmp.ge.s32.totalorder %s16, 4
      %s26 = sphi 0, %s28
      %s29 = sphi 0, %s26
      %s30 = sphi 0, %s29
      %s46 = sphi 0, %s30
      %s50 = sphi 0, %s50
      %s52 = sphi 0, %s50
      %s53 = sphi 0, %s52
      %s67 = sphi 0, %s53
      %s71 = sphi 0, %s71
      %s73 = sphi 0, %s71
      %s74 = sphi 0, %s73
      %s88 = sphi 0, %s74
      %s92 = sphi 0, %s92
      %s94 = sphi 0, %s92
      %s95 = sphi 0, %s94
      %s109 = sphi 0, %s95
      %s115 = sphi 0, %s117
      %s118 = sphi 0, %s115
      %s119 = sphi 0, %s118
      %s135 = sphi 0, %s119
    $region4: #{tpu_custom_call.1} parent=1 // loop_header_branch
      %19 = sbr.rel (%p17) target = $region8
    $region5: #{tpu_custom_call.1} parent=1 // loop_body
      %s21 = ssub.s32 %s16, 1
      %s22 = ssub.s32 %s16, 2
      %s23 = sadd.s32 %s16, 1
      %s24 = ssub.s32 %s16, %s23
      %p25 = scmp.eq.s32.totalorder %s24, 0
      %s27 = sadd.s32 %s26, 1
      %s28 = scalar_select %p25, %s26, %s27
      %p31 = pneg %p25
      %p32 = scmp.eq.s32.totalorder %s16, 1
      %p33 = por %p31, %p32
      %p34 = scmp.ne.s32.totalorder %s26, %s29
      %p35 = scmp.eq.s32.totalorder %s16, 0
      %p36 = por %p34, %p35
      %p37 = scmp.ne.s32.totalorder %s26, %s29
      %p38 = scmp.eq.s32.totalorder %s21, 1
      %p39 = por %p37, %p38
      %p40 = scmp.ne.s32.totalorder %s29, %s30
      %p41 = scmp.eq.s32.totalorder %s21, 0
      %p42 = por %p40, %p41
      %p43 = scmp.ne.s32.totalorder %s29, %s30
      %p44 = scmp.eq.s32.totalorder %s22, 1
      %p45 = por %p43, %p44
      %p47 = scmp.ne.s32.totalorder %s30, %s46
      %p48 = scmp.eq.s32.totalorder %s22, 0
      %p49 = por %p47, %p48
      %s51 = sadd.s32 %s50, 1
      %p54 = scmp.eq.s32.totalorder %s16, 1
      %p55 = scmp.ne.s32.totalorder %s50, %s52
      %p56 = scmp.eq.s32.totalorder %s16, 0
      %p57 = por %p55, %p56
      %p58 = scmp.ne.s32.totalorder %s50, %s52
      %p59 = scmp.eq.s32.totalorder %s21, 1
      %p60 = por %p58, %p59
      %p61 = scmp.ne.s32.totalorder %s52, %s53
      %p62 = scmp.eq.s32.totalorder %s21, 0
      %p63 = por %p61, %p62
      %p64 = scmp.ne.s32.totalorder %s52, %s53
      %p65 = scmp.eq.s32.totalorder %s22, 1
      %p66 = por %p64, %p65
      %p68 = scmp.ne.s32.totalorder %s53, %s67
      %p69 = scmp.eq.s32.totalorder %s22, 0
      %p70 = por %p68, %p69
      %s72 = sadd.s32 %s71, 1
      %p75 = scmp.eq.s32.totalorder %s16, 1
      %p76 = scmp.ne.s32.totalorder %s71, %s73
      %p77 = scmp.eq.s32.totalorder %s16, 0
      %p78 = por %p76, %p77
      %p79 = scmp.ne.s32.totalorder %s71, %s73
      %p80 = scmp.eq.s32.totalorder %s21, 1
      %p81 = por %p79, %p80
      %p82 = scmp.ne.s32.totalorder %s73, %s74
      %p83 = scmp.eq.s32.totalorder %s21, 0
      %p84 = por %p82, %p83
      %p85 = scmp.ne.s32.totalorder %s73, %s74
      %p86 = scmp.eq.s32.totalorder %s22, 1
      %p87 = por %p85, %p86
      %p89 = scmp.ne.s32.totalorder %s74, %s88
      %p90 = scmp.eq.s32.totalorder %s22, 0
      %p91 = por %p89, %p90
      %s93 = sadd.s32 %s92, 1
      %p96 = scmp.eq.s32.totalorder %s16, 1
      %p97 = scmp.ne.s32.totalorder %s92, %s94
      %p98 = scmp.eq.s32.totalorder %s16, 0
      %p99 = por %p97, %p98
      %p100 = scmp.ne.s32.totalorder %s92, %s94
      %p101 = scmp.eq.s32.totalorder %s21, 1
      %p102 = por %p100, %p101
      %p103 = scmp.ne.s32.totalorder %s94, %s95
      %p104 = scmp.eq.s32.totalorder %s21, 0
      %p105 = por %p103, %p104
      %p106 = scmp.ne.s32.totalorder %s94, %s95
      %p107 = scmp.eq.s32.totalorder %s22, 1
      %p108 = por %p106, %p107
      %p110 = scmp.ne.s32.totalorder %s95, %s109
      %p111 = scmp.eq.s32.totalorder %s22, 0
      %p112 = por %p110, %p111
      %s113 = ssub.s32 %s16, %s23
      %p114 = scmp.eq.s32.totalorder %s113, 0
      %s116 = sadd.s32 %s115, 1
      %s117 = scalar_select %p114, %s115, %s116
      %p120 = pneg %p114
      %p121 = scmp.eq.s32.totalorder %s16, 1
      %p122 = por %p120, %p121
      %p123 = scmp.ne.s32.totalorder %s115, %s118
      %p124 = scmp.eq.s32.totalorder %s16, 0
      %p125 = por %p123, %p124
      %p126 = scmp.ne.s32.totalorder %s115, %s118
      %p127 = scmp.eq.s32.totalorder %s21, 1
      %p128 = por %p126, %p127
      %p129 = scmp.ne.s32.totalorder %s118, %s119
      %p130 = scmp.eq.s32.totalorder %s21, 0
      %p131 = por %p129, %p130
      %p132 = scmp.ne.s32.totalorder %s118, %s119
      %p133 = scmp.eq.s32.totalorder %s22, 1
      %p134 = por %p132, %p133
      %p136 = scmp.ne.s32.totalorder %s119, %s135
      %p137 = scmp.eq.s32.totalorder %s22, 0
      %p138 = por %p136, %p137
      %p139 = scmp.le.s32.totalorder 1, %s16
      %p140 = scmp.lt.s32.totalorder %s16, 3
      %p141 = pnand %p139, %p140
      %p142 = pneg %p141
      // Predicated region
      $region9: #{tpu_custom_call.1} parent=5 // pred_check
        _
      $region10: #{tpu_custom_call.1} parent=5 // pred_check_branch
        %144 = sbr.rel (%p141) target = $region12
      $region11: #{tpu_custom_call.1} parent=5 // pred_region
        %s145 = ssub.s32 %s16, 1
        // Predicated region
        $region13: #{tpu_custom_call.1} parent=11 // pred_check
          %p146 = pneg %p63
        $region14: #{tpu_custom_call.1} parent=11 // pred_check_branch
          %148 = sbr.rel (%p146) target = $region16
        $region15: #{tpu_custom_call.1} parent=11 // pred_region
          _
        $region16: #{tpu_custom_call.1} parent=11 // pred_fallthru
          _
        // Predicated region
        $region17: #{tpu_custom_call.1} parent=11 // pred_check
          %p149 = pneg %p84
        $region18: #{tpu_custom_call.1} parent=11 // pred_check_branch
          %151 = sbr.rel (%p149) target = $region20
        $region19: #{tpu_custom_call.1} parent=11 // pred_region
          _
        $region20: #{tpu_custom_call.1} parent=11 // pred_fallthru
          _
        // Predicated region
        $region21: #{tpu_custom_call.1} parent=11 // pred_check
          %p152 = pneg %p105
        $region22: #{tpu_custom_call.1} parent=11 // pred_check_branch
          %154 = sbr.rel (%p152) target = $region24
        $region23: #{tpu_custom_call.1} parent=11 // pred_region
          _
        $region24: #{tpu_custom_call.1} parent=11 // pred_fallthru
          _
      $region12: #{tpu_custom_call.1} parent=5 // pred_fallthru
        _
      %p155 = scmp.lt.s32.totalorder %s16, 2
      // Predicated region
      $region25: #{tpu_custom_call.1} parent=5 // pred_check
        %p156 = pneg %p155
      $region26: #{tpu_custom_call.1} parent=5 // pred_check_branch
        %158 = sbr.rel (%p156) target = $region28
      $region27: #{tpu_custom_call.1} parent=5 // pred_region
        // Predicated region
        $region29: #{tpu_custom_call.1} parent=27 // pred_check
          %p159 = pneg %p36
        $region30: #{tpu_custom_call.1} parent=27 // pred_check_branch
          %161 = sbr.rel (%p159) target = $region32
        $region31: #{tpu_custom_call.1} parent=27 // pred_region
          %s162 = sand.u32 %s26, 1
          %s163 = scalar_lea.sflag [#allocation3], %s162
          %s164 = sand.u32 %s26, 1
          %s165 = smul.addr %s164, 8
          %s166 = scalar_lea.vmem [#allocation2], %s165
          %s168 = ssub.s32 128, 128
          %169 = vsyncadd %s163, %s168
          %s170 = smul.addr %s16, 2
          %s171 = smul.addr %s170, 64
          %s172 = scalar_lea.hbm %s0, %s171
          %s173 = sshll.u32 %s166, 4
          %s174 = int_to_ptr.vmem [resolvable:$true] %s173
          %179 = dma.hbm_to_vmem [thread:$0]  %s172, 128, %s174, %s163, 64, 64, 4
        $region32: #{tpu_custom_call.1} parent=27 // pred_fallthru
          _
      $region28: #{tpu_custom_call.1} parent=5 // pred_fallthru
        _
      %p180 = scmp.le.s32.totalorder 1, %s16
      %p181 = scmp.lt.s32.totalorder %s16, 3
      %p182 = pnand %p180, %p181
      %p183 = pneg %p182
      // Predicated region
      $region33: #{tpu_custom_call.1} parent=5 // pred_check
        _
      $region34: #{tpu_custom_call.1} parent=5 // pred_check_branch
        %185 = sbr.rel (%p182) target = $region36
      $region35: #{tpu_custom_call.1} parent=5 // pred_region
        %s186 = ssub.s32 %s16, 1
        %s187 = sand.u32 %s29, 1
        %s188 = scalar_lea.sflag [#allocation3], %s187
        %s189 = sand.u32 %s29, 1
        %s190 = smul.addr %s189, 8
        %s191 = scalar_lea.vmem [#allocation2], %s190
        // Predicated region
        $region37: #{tpu_custom_call.1} parent=35 // pred_check
          %p192 = pneg %p42
        $region38: #{tpu_custom_call.1} parent=35 // pred_check_branch
          %194 = sbr.rel (%p192) target = $region40
        $region39: #{tpu_custom_call.1} parent=35 // pred_region
          %195 = dma.done %s188, 128
        $region40: #{tpu_custom_call.1} parent=35 // pred_fallthru
          _
        %s196 = sand.u32 %s29, 1
        %s197 = scalar_lea.sflag [#allocation3], %s196
        %s198 = sand.u32 %s29, 1
        %s199 = smul.addr %s198, 8
        %s200 = scalar_lea.vmem [#allocation2], %s199
        %p201 = pneg %p42
        %p202 = pneg %p39
        %p203 = pneg %p63
        %p204 = pneg %p60
        %p205 = pneg %p84
        %p206 = pneg %p81
        %p207 = pneg %p105
        %p208 = pneg %p102
        %p209 = pneg %p131
        %p210 = pneg %p128
        %s211 = sand.u32 %s118, 1
        %s212 = scalar_lea.sflag [#allocation4], %s211
        %s213 = sand.u32 %s118, 1
        %s214 = smul.addr %s213, 4
        %s215 = scalar_lea.vmem [#allocation5], %s214
        %v217 = vld [vmem:[%s1] sm:$0x3]
        %v218 = vld [vmem:[%s2] sm:$0xf]
        %v219 = vld [vmem:[%s3] sm:$0xf]
        %v220 = vld [vmem:[%s191] sm:$0xf]
        %v221 = vld [vmem:[%s191 + $0x4] sm:$0xf]
        %v224 = vunpack.c.l.b16 %v220
        %v225 = vunpack.c.l.b16 %v221
        %v226 = vpack.c.b16 %v225, %v224
        %vm228 = vcmask 130048
        %v230 = vsel %vm228, %v217, 0
        %232 = vmatprep.subr.bf16.mxu0 0
        %233 = vmatpush1.bf16.msra.mxu0 %v226
        %234 = vmatprep.subr.bf16.mxu0 0
        %235 = vmatpush1.bf16.msra.mxu0 0
        %236 = vmatprep.subr.bf16.mxu0 0
        %237 = vmatpush1.bf16.msra.mxu0 0
        %238 = vmatprep.subr.bf16.mxu0 0
        %239 = vmatpush1.bf16.msra.mxu0 0
        %240 = vmatprep.subr.bf16.mxu0 0
        %241 = vmatpush1.bf16.msra.mxu0 0
        %242 = vmatprep.subr.bf16.mxu0 0
        %243 = vmatpush1.bf16.msra.mxu0 0
        %244 = vmatprep.subr.bf16.mxu0 0
        %245 = vmatpush1.bf16.msra.mxu0 0
        %246 = vmatprep.subr.bf16.mxu0 0
        %247 = vmatpush1.bf16.msra.mxu0 0
        %248 = vmatprep.subr.bf16.mxu0 0
        %249 = vmatpush1.bf16.msra.mxu0 0
        %250 = vmatprep.subr.bf16.mxu0 0
        %251 = vmatpush1.bf16.msra.mxu0 0
        %252 = vmatprep.subr.bf16.mxu0 0
        %253 = vmatpush1.bf16.msra.mxu0 0
        %254 = vmatprep.subr.bf16.mxu0 0
        %255 = vmatpush1.bf16.msra.mxu0 0
        %256 = vmatprep.subr.bf16.mxu0 0
        %257 = vmatpush1.bf16.msra.mxu0 0
        %258 = vmatprep.subr.bf16.mxu0 0
        %259 = vmatpush1.bf16.msra.mxu0 0
        %260 = vmatprep.subr.bf16.mxu0 0
        %261 = vmatpush1.bf16.msra.mxu0 0
        %262 = vmatprep.subr.bf16.mxu0 0
        %263 = vmatpush1.bf16.msra.mxu0 0
        %264 = vmatprep.mubr.bf16.mxu0 0
        %265 = vmatmul.mubr.bf16.gmra.mrb[0].mxu0 %v230
        %v266 = vpop.f32.mrb[0].mxu0
        %v267 = vadd.f32 0.0, %v266
        %v268 = vpop.f32.mrb[0].mxu0
        %v269 = vpop.f32.mrb[0].mxu0
        %v270 = vpop.f32.mrb[0].mxu0
        %271 = vdwg.mxu0
        %vm272 = vcmask 519168
        %v273 = vsel %vm272, %v267, 0.0
        %274 = vadd.xlane.f32.xlu0 %v273
        %v275 = vpop.xlane.xlu0 %274
        %v276 = vrot.slane %v275, 4
        %v277 = vadd.f32 %v275, %v276
        %v278 = vrot.slane %v277, 2
        %v279 = vadd.f32 %v277, %v278
        %v280 = vrot.slane %v279, 1
        %v281 = vadd.f32 %v279, %v280
        %s282 = vtos %v281
        %s283 = smul.f32 %s282, 0.00390625
        %v284 = vstv %s283
        %v285 = vsub.f32 %v267, %v284
        %v286 = vmul.f32 %v285, %v285
        %v287 = vsel %vm272, %v286, 0.0
        %288 = vadd.xlane.f32.xlu0 %v287
        %v289 = vpop.xlane.xlu0 %288
        %v290 = vrot.slane %v289, 4
        %v291 = vadd.f32 %v289, %v290
        %v292 = vrot.slane %v291, 2
        %v293 = vadd.f32 %v291, %v292
        %v294 = vrot.slane %v293, 1
        %v295 = vadd.f32 %v293, %v294
        %s296 = vtos %v295
        %s297 = smul.f32 %s296, 0.00390625
        %s298 = sadd.f32 %s297, 1e-05
        %v299 = vstv %s298
        %v300 = vrsqrt.pop %v299
        %s301 = vtos %v300
        %v302 = vstv %s301
        %v303 = vmul.f32 %v302, %v218
        %305 = vset.pattern.permute.xlu0 0
        %306 = vperm.xlu0 %305, %v303
        %v307 = vpop.permute.xlu0 %306
        %v309 = vmul.f32 %v285, %v307
        %311 = vset.pattern.permute.xlu0 0
        %312 = vperm.xlu0 %311, %v219
        %v313 = vpop.permute.xlu0 %312
        %v315 = vadd.f32 %v309, %v313
        %316 = vst.msk [vmem:[%s215] sm:$0xf] %vm272, %v315
        %s317 = sand.u32 %s118, 1
        %s318 = scalar_lea.sflag [#allocation4], %s317
        %s319 = sand.u32 %s118, 1
        %s320 = smul.addr %s319, 4
        %s321 = scalar_lea.vmem [#allocation5], %s320
        // Predicated region
        $region41: #{tpu_custom_call.1} parent=35 // pred_check
          %p322 = pneg %p128
        $region42: #{tpu_custom_call.1} parent=35 // pred_check_branch
          %324 = sbr.rel (%p322) target = $region44
        $region43: #{tpu_custom_call.1} parent=35 // pred_region
          %s326 = ssub.s32 64, 64
          %327 = vsyncadd %s318, %s326
          %s328 = smul.addr %s21, 64
          %s329 = scalar_lea.hbm %s4, %s328
          %s331 = sshll.u32 %s321, 4
          %s332 = int_to_ptr.vmem [resolvable:$true] %s331
          %334 = dma.vmem_to_hbm [thread:$0]  %s332, 64, %s329, %s318
        $region44: #{tpu_custom_call.1} parent=35 // pred_fallthru
          _
      $region36: #{tpu_custom_call.1} parent=5 // pred_fallthru
        _
      %p335 = scmp.le.s32.totalorder 2, %s16
      // Predicated region
      $region45: #{tpu_custom_call.1} parent=5 // pred_check
        %p336 = pneg %p335
      $region46: #{tpu_custom_call.1} parent=5 // pred_check_branch
        %338 = sbr.rel (%p336) target = $region48
      $region47: #{tpu_custom_call.1} parent=5 // pred_region
        %s339 = ssub.s32 %s16, 2
        // Predicated region
        $region49: #{tpu_custom_call.1} parent=47 // pred_check
          %p340 = pneg %p134
        $region50: #{tpu_custom_call.1} parent=47 // pred_check_branch
          %342 = sbr.rel (%p340) target = $region52
        $region51: #{tpu_custom_call.1} parent=47 // pred_region
          %s343 = sand.u32 %s119, 1
          %s344 = scalar_lea.sflag [#allocation4], %s343
          %s345 = sand.u32 %s119, 1
          %s346 = smul.addr %s345, 4
          %s347 = scalar_lea.vmem [#allocation5], %s346
          %348 = dma.done %s344, 64
        $region52: #{tpu_custom_call.1} parent=47 // pred_fallthru
          _
      $region48: #{tpu_custom_call.1} parent=5 // pred_fallthru
        _
    $region6: #{tpu_custom_call.1} parent=1 // loop_footer
      %s20 = sadd.s32 1, %s16
    $region7: #{tpu_custom_call.1} parent=1 // loop_footer_branch
      %15 = sbr.rel target = $region3
    $region8: #{tpu_custom_call.1} parent=1 // loop_exit
      _
    %349 = vsyncpa [#allocation3], 1
    %s350 = scalar_lea.sflag [#allocation3], 1
    %351 = vsyncpa %s350, 1
    %352 = vsyncpa [#allocation4], 1
    %s353 = scalar_lea.sflag [#allocation4], 1
    %354 = vsyncpa %s353, 1

</llo_original>
